<compile_context>
chip_gen: v6e
topology: v6e:2x2x1
jax: 0.10.0
libtpu: 0.0.40
codegen_flags: <defaults>
</compile_context>

<pallas_src>
import numpy as np
import jax
import jax.numpy as jnp
from jax import lax
from jax.experimental import pallas as pl
from jax.experimental.pallas import tpu as pltpu


def _cdiv(a, b):
    return -(-a // b)


def _round_up(x, m):
    return _cdiv(x, m) * m


def _rope_kernel(ids_ref, womega_ref, phase_ref, out_ref):
    # ids_ref:    (TS, G*n_axes)  integer (or float) positions, G packed rows
    # womega_ref: (G*n_axes, W)   block-diagonal interleaved inverse freqs (resident)
    # phase_ref:  (1, W)          0 on "sin" lanes, pi/2 on "cos" lanes (resident)
    # out_ref:    (TS, W)         sin(arg + phase)  ==  [sin, cos] interleaved
    ids = ids_ref[...].astype(jnp.float32)                     # free VPU cast
    arg = jnp.dot(ids, womega_ref[...],                        # MXU, exact-ish f32
                  preferred_element_type=jnp.float32,
                  precision=lax.Precision.HIGHEST)
    out_ref[...] = jnp.sin(arg + phase_ref[...])                # single transcendental


def _build_tables(axes_dim, theta, group):
    """Build the (G*n_axes, G*2*Dh) block-diagonal interleaved-omega table and
    the (1, G*2*Dh) phase table (0 on sin lanes, pi/2 on cos lanes)."""
    omega_parts, axis_parts = [], []
    for i, d in enumerate(axes_dim):
        assert d % 2 == 0, "The dimension must be even."
        scale = np.arange(0, d, 2, dtype=np.float64) / d
        omega_parts.append(1.0 / float(theta) ** scale)          # (d/2,)
        axis_parts.append(np.full(d // 2, i, dtype=np.int64))
    omega = np.concatenate(omega_parts)                          # (Dh,)
    axis_of = np.concatenate(axis_parts)                         # (Dh,)
    dh = omega.shape[0]
    two_dh = 2 * dh
    n_axes = len(axes_dim)

    omega2 = np.repeat(omega, 2)                                 # interleave pairs
    axis2 = np.repeat(axis_of, 2)
    base = np.zeros((n_axes, two_dh), dtype=np.float64)
    base[axis2, np.arange(two_dh)] = omega2                      # axis-masked rows
    base_phase = np.where(np.arange(two_dh) % 2 == 0, 0.0, np.pi / 2)

    width = group * two_dh
    womega = np.zeros((group * n_axes, width), dtype=np.float64)
    for g in range(group):
        womega[g * n_axes:(g + 1) * n_axes,
               g * two_dh:(g + 1) * two_dh] = base
    phase = np.tile(base_phase, group)[None, :]
    return womega.astype(np.float32), phase.astype(np.float32), dh


def _choose_seq_tile(n_rows, max_tile, min_tile):
    """Large tiles (<= max_tile) to amortize per-step overhead on v5e/v6e, but
    an even number of >= min_tile blocks whenever possible so v7x's two
    TensorCores get balanced work from the "parallel" seq axis."""
    if n_rows < 2 * min_tile:
        return _round_up(max(n_rows, 1), 8)          # single block
    n_blocks = max(2, _cdiv(n_rows, max_tile))
    if n_blocks % 2:
        n_blocks += 1                                # balanced 2-TC split
    return max(_round_up(_cdiv(n_rows, n_blocks), 8), 8)


def embed_nd_forward(ids, axes_dim, theta, *, max_seq_tile=4096, min_seq_tile=512):
    """JAX/Pallas equivalent of EmbedND.forward (diffusers >= 0.31 path).

    ids: (seq, n_axes) positions (integer or float dtype).
    Returns: (1, 1, seq, sum(axes_dim)//2, 1, 2) float32, last dim [sin, cos].
    """
    seq, n_axes = ids.shape
    assert n_axes == len(axes_dim)
    dh = sum(axes_dim) // 2
    two_dh = 2 * dh

    # Lane packing: make output rows 128-lane dense when the head dim is narrow.
    group = 1
    if two_dh < 128 and 128 % two_dh == 0:
        g = 128 // two_dh
        if seq % g == 0:
            group = g
    # TODO(synk): for two_dh < 128 with seq % group != 0 we fall back to
    # masked (lane-sparse) stores instead of padding the seq axis.

    womega_np, phase_np, dh2 = _build_tables(axes_dim, theta, group)
    assert dh2 == dh
    width = group * two_dh                           # output lane width
    gnx = group * n_axes                             # packed ids columns
    seq_p = seq // group

    ids_p = ids.reshape(seq_p, gnx)                  # free row-major reshape
    ts = _choose_seq_tile(seq_p, max_seq_tile, min_seq_tile)
    grid = (pl.cdiv(seq_p, ts),)

    out = pl.pallas_call(
        _rope_kernel,
        out_shape=jax.ShapeDtypeStruct((seq_p, width), jnp.float32),
        grid=grid,
        in_specs=[
            pl.BlockSpec((ts, gnx), lambda i: (i, 0)),        # seq-tiled ids
            pl.BlockSpec((gnx, width), lambda i: (0, 0)),     # resident omega table
            pl.BlockSpec((1, width), lambda i: (0, 0)),       # resident phase
        ],
        out_specs=pl.BlockSpec((ts, width), lambda i: (i, 0)),
        compiler_params=pltpu.CompilerParams(
            dimension_semantics=("parallel",)),
    )(ids_p, jnp.asarray(womega_np), jnp.asarray(phase_np))

    # Free metadata reshape: lanes already hold (sin, cos) interleaved pairs,
    # G packed rows per output row are contiguous in row-major order.
    return out.reshape(1, 1, seq, dh, 1, 2)


def _ref_embed_nd(ids_np, axes_dim, theta):
    """Pure-numpy float64 reference reproducing the PyTorch forward exactly."""
    ids_np = np.asarray(ids_np, dtype=np.float64)
    parts = []
    for i, d in enumerate(axes_dim):
        scale = np.arange(0, d, 2, dtype=np.float64) / d
        omega = 1.0 / float(theta) ** scale
        arg = ids_np[:, i:i + 1] * omega[None, :]                    # (seq, d/2)
        parts.append(np.stack([np.sin(arg), np.cos(arg)], axis=-1))  # (seq, d/2, 2)
    seq = ids_np.shape[0]
    return np.concatenate(parts, axis=1).reshape(1, 1, seq, -1, 1, 2).astype(np.float32)


if __name__ == "__main__":
    key = jax.random.PRNGKey(0)
    k1, k2 = jax.random.split(key)

    # Config 1: narrow head dim (exercises the G = 128/(2*Dh) lane-packing path).
    axes_dim1, theta1, seq1 = [8, 12, 12], 10000, 16
    ids1 = jax.random.randint(k1, (seq1, len(axes_dim1)), 0, 64, dtype=jnp.int32)
    out1 = jax.block_until_ready(embed_nd_forward(ids1, axes_dim1, theta1))
    ref1 = _ref_embed_nd(np.asarray(ids1), axes_dim1, theta1)
    assert out1.shape == ref1.shape, (out1.shape, ref1.shape)
    np.testing.assert_allclose(np.asarray(out1), ref1, rtol=1e-4, atol=2e-4)

    # Config 2: flux-like sum(axes_dim)=128 (lane-dense, unpacked path) with
    # larger positions to cover f32 phase error at realistic ids.
    axes_dim2, theta2, seq2 = [16, 56, 56], 10000, 24
    ids2 = jax.random.randint(k2, (seq2, len(axes_dim2)), 0, 2048, dtype=jnp.int32)
    out2 = jax.block_until_ready(embed_nd_forward(ids2, axes_dim2, theta2))
    ref2 = _ref_embed_nd(np.asarray(ids2), axes_dim2, theta2)
    assert out2.shape == ref2.shape, (out2.shape, ref2.shape)
    np.testing.assert_allclose(np.asarray(out2), ref2, rtol=2e-3, atol=3e-3)

    print("KERNEL_OK")
</pallas_src>

<mosaic_0001>
module attributes {stable_mosaic.version = 11 : i64} {
  func.func @_rope_kernel(%arg0: i32, %arg1: memref<8x12xi32, #tpu.memory_space<vmem>>, %arg2: memref<12x128xf32, #tpu.memory_space<vmem>>, %arg3: memref<1x128xf32, #tpu.memory_space<vmem>>, %arg4: memref<8x128xf32, #tpu.memory_space<vmem>>) attributes {dimension_semantics = [#tpu.dimension_semantics<parallel>], iteration_bounds = array<i64: 1>, scalar_prefetch = 0 : i64, scratch_operands = 0 : i64, tpu.core_type = #tpu.core_type<tc>, window_params = [{transform_indices = @transform_0, window_bounds = array<i64: 8, 12>}, {pipeline_mode = #tpu.pipeline_mode<synchronous>, transform_indices = @transform_1, window_bounds = array<i64: 12, 128>}, {pipeline_mode = #tpu.pipeline_mode<synchronous>, transform_indices = @transform_2, window_bounds = array<i64: 1, 128>}, {transform_indices = @transform_3, window_bounds = array<i64: 8, 128>}]} {
    %c0 = arith.constant 0 : index
    %c0_0 = arith.constant 0 : index
    %0 = vector.load %arg1[%c0, %c0_0] : memref<8x12xi32, #tpu.memory_space<vmem>>, vector<8x12xi32>
    %1 = arith.sitofp %0 : vector<8x12xi32> to vector<8x12xf32>
    %c0_1 = arith.constant 0 : index
    %c0_2 = arith.constant 0 : index
    %2 = vector.load %arg2[%c0_1, %c0_2] : memref<12x128xf32, #tpu.memory_space<vmem>>, vector<12x128xf32>
    %cst = arith.constant dense<0.000000e+00> : vector<8x128xf32>
    %3 = tpu.matmul %1, %2, %cst {dimension_numbers = #tpu.dot_dimension_numbers<[1], [0], [0], [1], [0, 0, 1, 1], [], []>, precision = #tpu.contract_precision<fp32>} : vector<8x12xf32>, vector<12x128xf32>, vector<8x128xf32> -> vector<8x128xf32>
    %c0_3 = arith.constant 0 : index
    %c0_4 = arith.constant 0 : index
    %4 = vector.load %arg3[%c0_3, %c0_4] : memref<1x128xf32, #tpu.memory_space<vmem>>, vector<1x128xf32>
    %5 = vector.broadcast %4 : vector<1x128xf32> to vector<8x128xf32>
    %6 = arith.addf %3, %5 : vector<8x128xf32>
    %7 = math.sin %6 : vector<8x128xf32>
    %c0_5 = arith.constant 0 : index
    %c0_6 = arith.constant 0 : index
    %8 = vector.load %arg4[%c0_5, %c0_6] : memref<8x128xf32, #tpu.memory_space<vmem>>, vector<8x128xf32>
    tpu.vector_store %arg4[%c0_5, %c0_6], %7 {strides = array<i32>} : memref<8x128xf32, #tpu.memory_space<vmem>>, vector<8x128xf32>,
    return
  }
  func.func @transform_0(%arg0: i32) -> (i32, i32) {
    %c0_i32 = arith.constant 0 : i32
    %c0_i32_0 = arith.constant 0 : i32
    return %arg0, %c0_i32 : i32, i32
  }
  func.func @transform_1(%arg0: i32) -> (i32, i32) {
    %c0_i32 = arith.constant 0 : i32
    %c0_i32_0 = arith.constant 0 : i32
    %c0_i32_1 = arith.constant 0 : i32
    return %c0_i32, %c0_i32_0 : i32, i32
  }
  func.func @transform_2(%arg0: i32) -> (i32, i32) {
    %c0_i32 = arith.constant 0 : i32
    %c0_i32_0 = arith.constant 0 : i32
    %c0_i32_1 = arith.constant 0 : i32
    return %c0_i32, %c0_i32_0 : i32, i32
  }
  func.func @transform_3(%arg0: i32) -> (i32, i32) {
    %c0_i32 = arith.constant 0 : i32
    %c0_i32_0 = arith.constant 0 : i32
    return %arg0, %c0_i32 : i32, i32
  }
}

</mosaic_0001>

<llo_original>
// kernel: tpu_custom_call.1
$region0: #{tpu_custom_call.1}
  #allocation0 [shape = 'u32[]', space=smem, size = 0x4, offset = 0x4, fixed_abs, tag = 'smem constant byte address 0x4 - core index']
  #allocation1 [shape = 'u32[144,128]{1,0:T(1,128)}', space=vmem, size = 0x12000, scoped, tag = 'internal scratch']
  %s0 = inlined_call_operand.hbm [shape: s32[4,12], index: 0, kind: input, shape index: {}]
  %s1 = inlined_call_operand.hbm [shape: f32[12,128], index: 1, kind: input, shape index: {}]
  %s2 = inlined_call_operand.vmem [shape: f32[1,128], index: 2, kind: input, shape index: {}]
  %s3 = inlined_call_operand.hbm [shape: f32[4,128], index: 3, kind: output, shape index: {}]
  %s4 = sld [smem:[#allocation0]]
  $region30: #{tpu_custom_call.1} parent=0
    _
  %s6 = ssub.s32 1, %s4
  %s7 = scalar_select 0, %s6, %s4
  $region1: #{tpu_custom_call.1} parent=0
    #allocation2 [shape = 'u8[4096]{0}', space=vmem, size = 0x1000, scoped, tag = 'input window, operand 0, single buffered']
    #allocation3 [shape = 's32[1]{0}', space=sflag, size = 0x4, scoped, tag = 'scoped memory for tpu_custom_call.1']
    #allocation4 [shape = 's32[1]{0}', space=sflag, size = 0x4, scoped, tag = 'scoped memory for tpu_custom_call.1']
    #allocation5 [shape = 'u8[8192]{0}', space=vmem, size = 0x2000, scoped, tag = 'input window, operand 1, single buffered']
    #allocation6 [shape = 's32[1]{0}', space=sflag, size = 0x4, scoped, tag = 'scoped memory for tpu_custom_call.1']
    #allocation7 [shape = 'u8[4096]{0}', space=vmem, size = 0x1000, scoped, tag = 'output window, operand 0, single buffered']
    %8 = vsyncpa [#allocation3], 0
    %9 = vsyncpa [#allocation6], 0
    %10 = vsyncpa [#allocation4], 0
    // Predicated region
    $region2: #{tpu_custom_call.1} parent=1 // pred_check
      _
    $region3: #{tpu_custom_call.1} parent=1 // pred_check_branch
      %12 = sbr.rel (0) target = $region5
    $region4: #{tpu_custom_call.1} parent=1 // pred_region
      %s14 = ssub.s32 128, 64
      %15 = vsyncadd [#allocation3], %s14
      %s16 = sshll.u32 [#allocation2], 4
      %s17 = int_to_ptr.vmem [resolvable:$true] %s16
      %22 = dma.hbm_to_vmem [thread:$0]  %s0, 64, %s17, [#allocation3], 64, 64, 4
    $region5: #{tpu_custom_call.1} parent=1 // pred_fallthru
      _
    // Predicated region
    $region6: #{tpu_custom_call.1} parent=1 // pred_check
      _
    $region7: #{tpu_custom_call.1} parent=1 // pred_check_branch
      %24 = sbr.rel (0) target = $region9
    $region8: #{tpu_custom_call.1} parent=1 // pred_region
      %s26 = ssub.s32 256, 256
      %27 = vsyncadd [#allocation6], %s26
      %s28 = sshll.u32 [#allocation5], 4
      %s29 = int_to_ptr.vmem [resolvable:$true] %s28
      %34 = dma.hbm_to_vmem [thread:$0]  %s1, 256, %s29, [#allocation6], 128, 128, 8
    $region9: #{tpu_custom_call.1} parent=1 // pred_fallthru
      _
    // Predicated region
    $region10: #{tpu_custom_call.1} parent=1 // pred_check
      _
    $region11: #{tpu_custom_call.1} parent=1 // pred_check_branch
      %36 = sbr.rel (0) target = $region13
    $region12: #{tpu_custom_call.1} parent=1 // pred_region
      _
    $region13: #{tpu_custom_call.1} parent=1 // pred_fallthru
      _
    // Predicated region
    $region14: #{tpu_custom_call.1} parent=1 // pred_check
      _
    $region15: #{tpu_custom_call.1} parent=1 // pred_check_branch
      %38 = sbr.rel (0) target = $region17
    $region16: #{tpu_custom_call.1} parent=1 // pred_region
      %39 = dma.done [#allocation3], 128
    $region17: #{tpu_custom_call.1} parent=1 // pred_fallthru
      _
    // Predicated region
    $region18: #{tpu_custom_call.1} parent=1 // pred_check
      _
    $region19: #{tpu_custom_call.1} parent=1 // pred_check_branch
      %41 = sbr.rel (0) target = $region21
    $region20: #{tpu_custom_call.1} parent=1 // pred_region
      %42 = dma.done [#allocation6], 256
    $region21: #{tpu_custom_call.1} parent=1 // pred_fallthru
      _
    %v43 = vld [vmem:[#allocation2] sm:$0xff]
    %v44 = vcvt.s32.f32 %v43
    %v45 = vld [vmem:[#allocation5] sm:$0xff]
    %v46 = vld [vmem:[#allocation5 + $0x8] sm:$0xf]
    %v47 = vld [vmem:[%s2] sm:$0x1]
    %v49 = vlaneseq
    %v50 = vshrl.u32 %v49, 7
    %v51 = vsub.s32 0, %v50
    %v52 = vrot.slane %v47, %v51
    %vm54 = vcmask 97280
    %v56 = vsel %vm54, %v44, 0
    %vm58 = vcmask 1043456
    %v60 = vsel %vm58, %v46, 0
    %62 = vmatprep.subr.mxu0 0.0
    %63 = vmatpush1.msra.mxu0 0.0
    %64 = vmatprep.subr.mxu0 0.0
    %65 = vmatpush1.msra.mxu0 0.0
    %66 = vmatprep.subr.mxu0 0.0
    %67 = vmatpush1.msra.mxu0 0.0
    %68 = vmatprep.subr.mxu0 0.0
    %69 = vmatpush1.msra.mxu0 0.0
    %70 = vmatprep.subr.mxu0 0.0
    %71 = vmatpush1.msra.mxu0 0.0
    %72 = vmatprep.subr.mxu0 0.0
    %73 = vmatpush1.msra.mxu0 0.0
    %74 = vmatprep.subr.mxu0 0.0
    %75 = vmatpush1.msra.mxu0 0.0
    %76 = vmatprep.subr.mxu0 0.0
    %77 = vmatpush1.msra.mxu0 0.0
    %78 = vmatprep.subr.mxu0 0.0
    %79 = vmatpush1.msra.mxu0 0.0
    %80 = vmatprep.subr.mxu0 0.0
    %81 = vmatpush1.msra.mxu0 0.0
    %82 = vmatprep.subr.mxu0 0.0
    %83 = vmatpush1.msra.mxu0 0.0
    %84 = vmatprep.subr.mxu0 0.0
    %85 = vmatpush1.msra.mxu0 0.0
    %86 = vmatprep.subr.mxu0 0.0
    %87 = vmatpush1.msra.mxu0 0.0
    %88 = vmatprep.subr.mxu0 0.0
    %89 = vmatpush1.msra.mxu0 0.0
    %90 = vmatprep.subr.mxu0 0.0
    %v91 = vand.u32 %v60, 4294901760
    %92 = vmatpush1.msra.mxu0 %v91
    %93 = vmatprep.subr.mxu0 0.0
    %v94 = vand.u32 %v45, 4294901760
    %95 = vmatpush1.msra.mxu0 %v94
    %96 = vmatprep.subr.mxu0 0.0
    %97 = vmatpush2.msra.mxu0 0.0
    %98 = vmatprep.subr.mxu0 0.0
    %99 = vmatpush2.msra.mxu0 0.0
    %100 = vmatprep.subr.mxu0 0.0
    %101 = vmatpush2.msra.mxu0 0.0
    %102 = vmatprep.subr.mxu0 0.0
    %103 = vmatpush2.msra.mxu0 0.0
    %104 = vmatprep.subr.mxu0 0.0
    %105 = vmatpush2.msra.mxu0 0.0
    %106 = vmatprep.subr.mxu0 0.0
    %107 = vmatpush2.msra.mxu0 0.0
    %108 = vmatprep.subr.mxu0 0.0
    %109 = vmatpush2.msra.mxu0 0.0
    %110 = vmatprep.subr.mxu0 0.0
    %111 = vmatpush2.msra.mxu0 0.0
    %112 = vmatprep.subr.mxu0 0.0
    %113 = vmatpush2.msra.mxu0 0.0
    %114 = vmatprep.subr.mxu0 0.0
    %115 = vmatpush2.msra.mxu0 0.0
    %116 = vmatprep.subr.mxu0 0.0
    %117 = vmatpush2.msra.mxu0 0.0
    %118 = vmatprep.subr.mxu0 0.0
    %119 = vmatpush2.msra.mxu0 0.0
    %120 = vmatprep.subr.mxu0 0.0
    %121 = vmatpush2.msra.mxu0 0.0
    %122 = vmatprep.subr.mxu0 0.0
    %123 = vmatpush2.msra.mxu0 0.0
    %124 = vmatprep.subr.mxu0 0.0
    %125 = vmatpush2.msra.mxu0 0.0
    %126 = vmatprep.subr.mxu0 0.0
    %127 = vmatpush2.msra.mxu0 0.0
    %128 = vmatprep.mubr.f32.mxu0 0.0
    %v129 = vand.u32 %v56, 4294901760
    %v130 = vsub.f32 %v56, %v129
    %v131 = vand.u32 %v130, 4294901760
    %v132 = vsub.f32 %v130, %v131
    %v133 = vand.u32 %v132, 4294901760
    %134 = vmatmul.mubr.f32.gmra.mxu0 %v133
    %v135 = vpop.f32.mrf.mxu0
    %v136 = vadd.f32 %v52, %v135
    %v137 = vpop.f32.mrf.mxu0
    %138 = vdwg.mxu0
    %139 = vmatprep.subr.mxu0 0.0
    %140 = vmatpush1.msra.mxu0 0.0
    %141 = vmatprep.subr.mxu0 0.0
    %142 = vmatpush1.msra.mxu0 0.0
    %143 = vmatprep.subr.mxu0 0.0
    %144 = vmatpush1.msra.mxu0 0.0
    %145 = vmatprep.subr.mxu0 0.0
    %146 = vmatpush1.msra.mxu0 0.0
    %147 = vmatprep.subr.mxu0 0.0
    %148 = vmatpush1.msra.mxu0 0.0
    %149 = vmatprep.subr.mxu0 0.0
    %150 = vmatpush1.msra.mxu0 0.0
    %151 = vmatprep.subr.mxu0 0.0
    %152 = vmatpush1.msra.mxu0 0.0
    %153 = vmatprep.subr.mxu0 0.0
    %154 = vmatpush1.msra.mxu0 0.0
    %155 = vmatprep.subr.mxu0 0.0
    %156 = vmatpush1.msra.mxu0 0.0
    %157 = vmatprep.subr.mxu0 0.0
    %158 = vmatpush1.msra.mxu0 0.0
    %159 = vmatprep.subr.mxu0 0.0
    %160 = vmatpush1.msra.mxu0 0.0
    %161 = vmatprep.subr.mxu0 0.0
    %162 = vmatpush1.msra.mxu0 0.0
    %163 = vmatprep.subr.mxu0 0.0
    %164 = vmatpush1.msra.mxu0 0.0
    %165 = vmatprep.subr.mxu0 0.0
    %166 = vmatpush1.msra.mxu0 0.0
    %167 = vmatprep.subr.mxu0 0.0
    %v168 = vand.u32 %v60, 4294901760
    %v169 = vsub.f32 %v60, %v168
    %v170 = vand.u32 %v169, 4294901760
    %v171 = vsub.f32 %v169, %v170
    %v172 = vand.u32 %v171, 4294901760
    %173 = vmatpush1.msra.mxu0 %v172
    %174 = vmatprep.subr.mxu0 0.0
    %v175 = vand.u32 %v45, 4294901760
    %v176 = vsub.f32 %v45, %v175
    %v177 = vand.u32 %v176, 4294901760
    %v178 = vsub.f32 %v176, %v177
    %v179 = vand.u32 %v178, 4294901760
    %180 = vmatpush1.msra.mxu0 %v179
    %181 = vmatprep.subr.mxu0 0.0
    %182 = vmatpush2.msra.mxu0 0.0
    %183 = vmatprep.subr.mxu0 0.0
    %184 = vmatpush2.msra.mxu0 0.0
    %185 = vmatprep.subr.mxu0 0.0
    %186 = vmatpush2.msra.mxu0 0.0
    %187 = vmatprep.subr.mxu0 0.0
    %188 = vmatpush2.msra.mxu0 0.0
    %189 = vmatprep.subr.mxu0 0.0
    %190 = vmatpush2.msra.mxu0 0.0
    %191 = vmatprep.subr.mxu0 0.0
    %192 = vmatpush2.msra.mxu0 0.0
    %193 = vmatprep.subr.mxu0 0.0
    %194 = vmatpush2.msra.mxu0 0.0
    %195 = vmatprep.subr.mxu0 0.0
    %196 = vmatpush2.msra.mxu0 0.0
    %197 = vmatprep.subr.mxu0 0.0
    %198 = vmatpush2.msra.mxu0 0.0
    %199 = vmatprep.subr.mxu0 0.0
    %200 = vmatpush2.msra.mxu0 0.0
    %201 = vmatprep.subr.mxu0 0.0
    %202 = vmatpush2.msra.mxu0 0.0
    %203 = vmatprep.subr.mxu0 0.0
    %204 = vmatpush2.msra.mxu0 0.0
    %205 = vmatprep.subr.mxu0 0.0
    %206 = vmatpush2.msra.mxu0 0.0
    %207 = vmatprep.subr.mxu0 0.0
    %208 = vmatpush2.msra.mxu0 0.0
    %209 = vmatprep.subr.mxu0 0.0
    %210 = vmatpush2.msra.mxu0 0.0
    %211 = vmatprep.subr.mxu0 0.0
    %212 = vmatpush2.msra.mxu0 0.0
    %213 = vmatprep.mubr.f32.mxu0 0.0
    %v214 = vand.u32 %v56, 4294901760
    %215 = vmatmul.mubr.f32.gmra.mxu0 %v214
    %v216 = vpop.f32.mrf.mxu0
    %v217 = vadd.f32 %v136, %v216
    %v218 = vpop.f32.mrf.mxu0
    %219 = vdwg.mxu0
    %220 = vmatprep.subr.mxu0 0.0
    %221 = vmatpush1.msra.mxu0 0.0
    %222 = vmatprep.subr.mxu0 0.0
    %223 = vmatpush1.msra.mxu0 0.0
    %224 = vmatprep.subr.mxu0 0.0
    %225 = vmatpush1.msra.mxu0 0.0
    %226 = vmatprep.subr.mxu0 0.0
    %227 = vmatpush1.msra.mxu0 0.0
    %228 = vmatprep.subr.mxu0 0.0
    %229 = vmatpush1.msra.mxu0 0.0
    %230 = vmatprep.subr.mxu0 0.0
    %231 = vmatpush1.msra.mxu0 0.0
    %232 = vmatprep.subr.mxu0 0.0
    %233 = vmatpush1.msra.mxu0 0.0
    %234 = vmatprep.subr.mxu0 0.0
    %235 = vmatpush1.msra.mxu0 0.0
    %236 = vmatprep.subr.mxu0 0.0
    %237 = vmatpush1.msra.mxu0 0.0
    %238 = vmatprep.subr.mxu0 0.0
    %239 = vmatpush1.msra.mxu0 0.0
    %240 = vmatprep.subr.mxu0 0.0
    %241 = vmatpush1.msra.mxu0 0.0
    %242 = vmatprep.subr.mxu0 0.0
    %243 = vmatpush1.msra.mxu0 0.0
    %244 = vmatprep.subr.mxu0 0.0
    %245 = vmatpush1.msra.mxu0 0.0
    %246 = vmatprep.subr.mxu0 0.0
    %247 = vmatpush1.msra.mxu0 0.0
    %248 = vmatprep.subr.mxu0 0.0
    %v249 = vand.u32 %v60, 4294901760
    %v250 = vsub.f32 %v60, %v249
    %251 = vmatpush1.msra.mxu0 %v250
    %252 = vmatprep.subr.mxu0 0.0
    %v253 = vand.u32 %v45, 4294901760
    %v254 = vsub.f32 %v45, %v253
    %255 = vmatpush1.msra.mxu0 %v254
    %256 = vmatprep.subr.mxu0 0.0
    %257 = vmatpush2.msra.mxu0 0.0
    %258 = vmatprep.subr.mxu0 0.0
    %259 = vmatpush2.msra.mxu0 0.0
    %260 = vmatprep.subr.mxu0 0.0
    %261 = vmatpush2.msra.mxu0 0.0
    %262 = vmatprep.subr.mxu0 0.0
    %263 = vmatpush2.msra.mxu0 0.0
    %264 = vmatprep.subr.mxu0 0.0
    %265 = vmatpush2.msra.mxu0 0.0
    %266 = vmatprep.subr.mxu0 0.0
    %267 = vmatpush2.msra.mxu0 0.0
    %268 = vmatprep.subr.mxu0 0.0
    %269 = vmatpush2.msra.mxu0 0.0
    %270 = vmatprep.subr.mxu0 0.0
    %271 = vmatpush2.msra.mxu0 0.0
    %272 = vmatprep.subr.mxu0 0.0
    %273 = vmatpush2.msra.mxu0 0.0
    %274 = vmatprep.subr.mxu0 0.0
    %275 = vmatpush2.msra.mxu0 0.0
    %276 = vmatprep.subr.mxu0 0.0
    %277 = vmatpush2.msra.mxu0 0.0
    %278 = vmatprep.subr.mxu0 0.0
    %279 = vmatpush2.msra.mxu0 0.0
    %280 = vmatprep.subr.mxu0 0.0
    %281 = vmatpush2.msra.mxu0 0.0
    %282 = vmatprep.subr.mxu0 0.0
    %283 = vmatpush2.msra.mxu0 0.0
    %284 = vmatprep.subr.mxu0 0.0
    %285 = vmatpush2.msra.mxu0 0.0
    %286 = vmatprep.subr.mxu0 0.0
    %287 = vmatpush2.msra.mxu0 0.0
    %288 = vmatprep.mubr.f32.mxu0 0.0
    %v289 = vand.u32 %v56, 4294901760
    %v290 = vsub.f32 %v56, %v289
    %291 = vmatmul.mubr.f32.gmra.mxu0 %v290
    %v292 = vpop.f32.mrf.mxu0
    %v293 = vadd.f32 %v217, %v292
    %v294 = vpop.f32.mrf.mxu0
    %295 = vdwg.mxu0
    %296 = vmatprep.subr.mxu0 0.0
    %297 = vmatpush1.msra.mxu0 0.0
    %298 = vmatprep.subr.mxu0 0.0
    %299 = vmatpush1.msra.mxu0 0.0
    %300 = vmatprep.subr.mxu0 0.0
    %301 = vmatpush1.msra.mxu0 0.0
    %302 = vmatprep.subr.mxu0 0.0
    %303 = vmatpush1.msra.mxu0 0.0
    %304 = vmatprep.subr.mxu0 0.0
    %305 = vmatpush1.msra.mxu0 0.0
    %306 = vmatprep.subr.mxu0 0.0
    %307 = vmatpush1.msra.mxu0 0.0
    %308 = vmatprep.subr.mxu0 0.0
    %309 = vmatpush1.msra.mxu0 0.0
    %310 = vmatprep.subr.mxu0 0.0
    %311 = vmatpush1.msra.mxu0 0.0
    %312 = vmatprep.subr.mxu0 0.0
    %313 = vmatpush1.msra.mxu0 0.0
    %314 = vmatprep.subr.mxu0 0.0
    %315 = vmatpush1.msra.mxu0 0.0
    %316 = vmatprep.subr.mxu0 0.0
    %317 = vmatpush1.msra.mxu0 0.0
    %318 = vmatprep.subr.mxu0 0.0
    %319 = vmatpush1.msra.mxu0 0.0
    %320 = vmatprep.subr.mxu0 0.0
    %321 = vmatpush1.msra.mxu0 0.0
    %322 = vmatprep.subr.mxu0 0.0
    %323 = vmatpush1.msra.mxu0 0.0
    %324 = vmatprep.subr.mxu0 0.0
    %v325 = vand.u32 %v60, 4294901760
    %326 = vmatpush1.msra.mxu0 %v325
    %327 = vmatprep.subr.mxu0 0.0
    %v328 = vand.u32 %v45, 4294901760
    %329 = vmatpush1.msra.mxu0 %v328
    %330 = vmatprep.subr.mxu0 0.0
    %331 = vmatpush2.msra.mxu0 0.0
    %332 = vmatprep.subr.mxu0 0.0
    %333 = vmatpush2.msra.mxu0 0.0
    %334 = vmatprep.subr.mxu0 0.0
    %335 = vmatpush2.msra.mxu0 0.0
    %336 = vmatprep.subr.mxu0 0.0
    %337 = vmatpush2.msra.mxu0 0.0
    %338 = vmatprep.subr.mxu0 0.0
    %339 = vmatpush2.msra.mxu0 0.0
    %340 = vmatprep.subr.mxu0 0.0
    %341 = vmatpush2.msra.mxu0 0.0
    %342 = vmatprep.subr.mxu0 0.0
    %343 = vmatpush2.msra.mxu0 0.0
    %344 = vmatprep.subr.mxu0 0.0
    %345 = vmatpush2.msra.mxu0 0.0
    %346 = vmatprep.subr.mxu0 0.0
    %347 = vmatpush2.msra.mxu0 0.0
    %348 = vmatprep.subr.mxu0 0.0
    %349 = vmatpush2.msra.mxu0 0.0
    %350 = vmatprep.subr.mxu0 0.0
    %351 = vmatpush2.msra.mxu0 0.0
    %352 = vmatprep.subr.mxu0 0.0
    %353 = vmatpush2.msra.mxu0 0.0
    %354 = vmatprep.subr.mxu0 0.0
    %355 = vmatpush2.msra.mxu0 0.0
    %356 = vmatprep.subr.mxu0 0.0
    %357 = vmatpush2.msra.mxu0 0.0
    %358 = vmatprep.subr.mxu0 0.0
    %359 = vmatpush2.msra.mxu0 0.0
    %360 = vmatprep.subr.mxu0 0.0
    %361 = vmatpush2.msra.mxu0 0.0
    %362 = vmatprep.mubr.f32.mxu0 0.0
    %v363 = vand.u32 %v56, 4294901760
    %v364 = vsub.f32 %v56, %v363
    %v365 = vand.u32 %v364, 4294901760
    %366 = vmatmul.mubr.f32.gmra.mxu0 %v365
    %v367 = vpop.f32.mrf.mxu0
    %v368 = vadd.f32 %v293, %v367
    %v369 = vpop.f32.mrf.mxu0
    %370 = vdwg.mxu0
    %371 = vmatprep.subr.mxu0 0.0
    %372 = vmatpush1.msra.mxu0 0.0
    %373 = vmatprep.subr.mxu0 0.0
    %374 = vmatpush1.msra.mxu0 0.0
    %375 = vmatprep.subr.mxu0 0.0
    %376 = vmatpush1.msra.mxu0 0.0
    %377 = vmatprep.subr.mxu0 0.0
    %378 = vmatpush1.msra.mxu0 0.0
    %379 = vmatprep.subr.mxu0 0.0
    %380 = vmatpush1.msra.mxu0 0.0
    %381 = vmatprep.subr.mxu0 0.0
    %382 = vmatpush1.msra.mxu0 0.0
    %383 = vmatprep.subr.mxu0 0.0
    %384 = vmatpush1.msra.mxu0 0.0
    %385 = vmatprep.subr.mxu0 0.0
    %386 = vmatpush1.msra.mxu0 0.0
    %387 = vmatprep.subr.mxu0 0.0
    %388 = vmatpush1.msra.mxu0 0.0
    %389 = vmatprep.subr.mxu0 0.0
    %390 = vmatpush1.msra.mxu0 0.0
    %391 = vmatprep.subr.mxu0 0.0
    %392 = vmatpush1.msra.mxu0 0.0
    %393 = vmatprep.subr.mxu0 0.0
    %394 = vmatpush1.msra.mxu0 0.0
    %395 = vmatprep.subr.mxu0 0.0
    %396 = vmatpush1.msra.mxu0 0.0
    %397 = vmatprep.subr.mxu0 0.0
    %398 = vmatpush1.msra.mxu0 0.0
    %399 = vmatprep.subr.mxu0 0.0
    %v400 = vand.u32 %v60, 4294901760
    %v401 = vsub.f32 %v60, %v400
    %v402 = vand.u32 %v401, 4294901760
    %403 = vmatpush1.msra.mxu0 %v402
    %404 = vmatprep.subr.mxu0 0.0
    %v405 = vand.u32 %v45, 4294901760
    %v406 = vsub.f32 %v45, %v405
    %v407 = vand.u32 %v406, 4294901760
    %408 = vmatpush1.msra.mxu0 %v407
    %409 = vmatprep.subr.mxu0 0.0
    %410 = vmatpush2.msra.mxu0 0.0
    %411 = vmatprep.subr.mxu0 0.0
    %412 = vmatpush2.msra.mxu0 0.0
    %413 = vmatprep.subr.mxu0 0.0
    %414 = vmatpush2.msra.mxu0 0.0
    %415 = vmatprep.subr.mxu0 0.0
    %416 = vmatpush2.msra.mxu0 0.0
    %417 = vmatprep.subr.mxu0 0.0
    %418 = vmatpush2.msra.mxu0 0.0
    %419 = vmatprep.subr.mxu0 0.0
    %420 = vmatpush2.msra.mxu0 0.0
    %421 = vmatprep.subr.mxu0 0.0
    %422 = vmatpush2.msra.mxu0 0.0
    %423 = vmatprep.subr.mxu0 0.0
    %424 = vmatpush2.msra.mxu0 0.0
    %425 = vmatprep.subr.mxu0 0.0
    %426 = vmatpush2.msra.mxu0 0.0
    %427 = vmatprep.subr.mxu0 0.0
    %428 = vmatpush2.msra.mxu0 0.0
    %429 = vmatprep.subr.mxu0 0.0
    %430 = vmatpush2.msra.mxu0 0.0
    %431 = vmatprep.subr.mxu0 0.0
    %432 = vmatpush2.msra.mxu0 0.0
    %433 = vmatprep.subr.mxu0 0.0
    %434 = vmatpush2.msra.mxu0 0.0
    %435 = vmatprep.subr.mxu0 0.0
    %436 = vmatpush2.msra.mxu0 0.0
    %437 = vmatprep.subr.mxu0 0.0
    %438 = vmatpush2.msra.mxu0 0.0
    %439 = vmatprep.subr.mxu0 0.0
    %440 = vmatpush2.msra.mxu0 0.0
    %441 = vmatprep.mubr.f32.mxu0 0.0
    %v442 = vand.u32 %v56, 4294901760
    %443 = vmatmul.mubr.f32.gmra.mxu0 %v442
    %v444 = vpop.f32.mrf.mxu0
    %v445 = vadd.f32 %v368, %v444
    %v446 = vpop.f32.mrf.mxu0
    %447 = vdwg.mxu0
    %448 = vmatprep.subr.mxu0 0.0
    %449 = vmatpush1.msra.mxu0 0.0
    %450 = vmatprep.subr.mxu0 0.0
    %451 = vmatpush1.msra.mxu0 0.0
    %452 = vmatprep.subr.mxu0 0.0
    %453 = vmatpush1.msra.mxu0 0.0
    %454 = vmatprep.subr.mxu0 0.0
    %455 = vmatpush1.msra.mxu0 0.0
    %456 = vmatprep.subr.mxu0 0.0
    %457 = vmatpush1.msra.mxu0 0.0
    %458 = vmatprep.subr.mxu0 0.0
    %459 = vmatpush1.msra.mxu0 0.0
    %460 = vmatprep.subr.mxu0 0.0
    %461 = vmatpush1.msra.mxu0 0.0
    %462 = vmatprep.subr.mxu0 0.0
    %463 = vmatpush1.msra.mxu0 0.0
    %464 = vmatprep.subr.mxu0 0.0
    %465 = vmatpush1.msra.mxu0 0.0
    %466 = vmatprep.subr.mxu0 0.0
    %467 = vmatpush1.msra.mxu0 0.0
    %468 = vmatprep.subr.mxu0 0.0
    %469 = vmatpush1.msra.mxu0 0.0
    %470 = vmatprep.subr.mxu0 0.0
    %471 = vmatpush1.msra.mxu0 0.0
    %472 = vmatprep.subr.mxu0 0.0
    %473 = vmatpush1.msra.mxu0 0.0
    %474 = vmatprep.subr.mxu0 0.0
    %475 = vmatpush1.msra.mxu0 0.0
    %476 = vmatprep.subr.mxu0 0.0
    %v477 = vand.u32 %v60, 4294901760
    %478 = vmatpush1.msra.mxu0 %v477
    %479 = vmatprep.subr.mxu0 0.0
    %v480 = vand.u32 %v45, 4294901760
    %481 = vmatpush1.msra.mxu0 %v480
    %482 = vmatprep.subr.mxu0 0.0
    %483 = vmatpush2.msra.mxu0 0.0
    %484 = vmatprep.subr.mxu0 0.0
    %485 = vmatpush2.msra.mxu0 0.0
    %486 = vmatprep.subr.mxu0 0.0
    %487 = vmatpush2.msra.mxu0 0.0
    %488 = vmatprep.subr.mxu0 0.0
    %489 = vmatpush2.msra.mxu0 0.0
    %490 = vmatprep.subr.mxu0 0.0
    %491 = vmatpush2.msra.mxu0 0.0
    %492 = vmatprep.subr.mxu0 0.0
    %493 = vmatpush2.msra.mxu0 0.0
    %494 = vmatprep.subr.mxu0 0.0
    %495 = vmatpush2.msra.mxu0 0.0
    %496 = vmatprep.subr.mxu0 0.0
    %497 = vmatpush2.msra.mxu0 0.0
    %498 = vmatprep.subr.mxu0 0.0
    %499 = vmatpush2.msra.mxu0 0.0
    %500 = vmatprep.subr.mxu0 0.0
    %501 = vmatpush2.msra.mxu0 0.0
    %502 = vmatprep.subr.mxu0 0.0
    %503 = vmatpush2.msra.mxu0 0.0
    %504 = vmatprep.subr.mxu0 0.0
    %505 = vmatpush2.msra.mxu0 0.0
    %506 = vmatprep.subr.mxu0 0.0
    %507 = vmatpush2.msra.mxu0 0.0
    %508 = vmatprep.subr.mxu0 0.0
    %509 = vmatpush2.msra.mxu0 0.0
    %510 = vmatprep.subr.mxu0 0.0
    %511 = vmatpush2.msra.mxu0 0.0
    %512 = vmatprep.subr.mxu0 0.0
    %513 = vmatpush2.msra.mxu0 0.0
    %514 = vmatprep.mubr.f32.mxu0 0.0
    %v515 = vand.u32 %v56, 4294901760
    %516 = vmatmul.mubr.f32.gmra.mxu0 %v515
    %v517 = vpop.f32.mrf.mxu0
    %v518 = vadd.f32 %v445, %v517
    %v519 = vpop.f32.mrf.mxu0
    %520 = vdwg.mxu0
    %v521 = vand.u32 2147483647, %v518
    %vm522 = vcmp.le.f32.partialorder %v521, 0.7853982
    %vm523 = vcmp.lt.s32.totalorder %v518, 0
    %v524 = vand.u32 %v518, 2139095040
    %v525 = vshrl.u32 %v524, 23
    %v526 = vsub.s32 %v525, 127
    %v527 = vand.u32 2147483647, %v518
    %v528 = vand.u32 %v527, 8388607
    %v529 = vor.u32 %v528, 8388608
    %v530 = vsub.s32 0, %v529
    %v531 = vadd.s32 %v526, 1
    %vm532 = vcmp.gt.s32.totalorder %v531, 0
    %v533 = vsel %vm532, %v531, 0
    %v534 = vshrl.u32 %v533, 5
    %v535 = vand.u32 %v533, 31
    %v536 = vsub.s32 32, %v535
    %v537 = vshrl.u32 683565275, %v536
    %v538 = vshll.u32 683565275, %v535
    %v539 = vshrl.u32 2475754826, %v536
    %v540 = vor.u32 %v538, %v539
    %v541 = vshll.u32 2475754826, %v535
    %v542 = vshrl.u32 2131351028, %v536
    %v543 = vor.u32 %v541, %v542
    %v544 = vshll.u32 2131351028, %v535
    %v545 = vshrl.u32 2102212464, %v536
    %v546 = vor.u32 %v544, %v545
    %v547 = vshll.u32 2102212464, %v535
    %v548 = vshrl.u32 920167782, %v536
    %v549 = vor.u32 %v547, %v548
    %v550 = vshll.u32 920167782, %v535
    %v551 = vshrl.u32 1326507024, %v536
    %v552 = vor.u32 %v550, %v551
    %vm553 = vcmp.lt.s32.totalorder %v534, 1
    %vm554 = vcmp.lt.s32.totalorder %v534, 2
    %vm555 = vcmp.lt.s32.totalorder %v534, 3
    %vm556 = vcmp.lt.s32.totalorder %v534, 4
    %v557 = vsel %vm553, %v537, %v540
    %v558 = vsel %vm556, %v546, 2102212464
    %v559 = vsel %vm555, %v543, %v558
    %v560 = vsel %vm554, %v557, %v559
    %v561 = vsel %vm553, %v540, %v543
    %v562 = vsel %vm556, %v549, 920167782
    %v563 = vsel %vm555, %v546, %v562
    %v564 = vsel %vm554, %v561, %v563
    %v565 = vsel %vm553, %v543, %v546
    %v566 = vsel %vm556, %v552, 1326507024
    %v567 = vsel %vm555, %v549, %v566
    %v568 = vsel %vm554, %v565, %v567
    %v569 = vshll.u32 %v529, 8
    %v570 = vmul.u32.u64.compose %v569, %v568
    %v571 = vextract.low.u32 %v570
    %v572 = vextract.high.u32 %v570
    %v573 = vmul.u32.u64.compose %v569, %v564
    %v574 = vextract.low.u32 %v573
    %v575 = vextract.high.u32 %v573
    %v576 = vmul.u32 %v569, %v560
    %v577 = vadd.s32 %v572, %v574
    %vm578 = vc.u32 %v572, %v574
    %v579 = vadd.s32 %v575, 1
    %v580 = vsel %vm578, %v579, %v575
    %v581 = vadd.s32 %v576, %v580
    %v582 = vadd.s32 %v581, 536870912
    %v583 = vshrl.u32 %v582, 30
    %v584 = vshll.u32 %v583, 30
    %v585 = vsub.s32 %v581, %v584
    %vm586 = vcmp.lt.s32.totalorder %v585, 0
    %v587 = vsub.s32 0, %v585
    %v588 = vsel %vm586, %v587, %v585
    %v589 = vclz %v588
    %v590 = vsub.s32 %v589, 2
    %vm591 = vcmp.gt.s32.totalorder 0, %v590
    %v592 = vsel %vm591, 0, %v590
    %v593 = vsub.s32 32, %v592
    %v594 = vshll.u32 %v585, %v592
    %v595 = vshrl.u32 %v577, %v593
    %v596 = vor.u32 %v594, %v595
    %v597 = vsub.s32 4294967266, %v592
    %v598 = vadd.s32 %v597, 127
    %v599 = vshll.u32 %v598, 23
    %v600 = vor.u32 4788187, %v599
    %v601 = vand.u32 2147483647, %v600
    %v603 = vcvt.s32.f32 %v596
    %v604 = vmul.f32 %v603, %v601
    %v605 = vxor.u32 %v604, 2147483648
    %v606 = vsel %vm523, %v605, %v604
    %v607 = vsub.s32 4, %v583
    %v608 = vsel %vm523, %v607, %v583
    %v609 = vsel %vm522, %v518, %v606
    %v610 = vsel %vm522, 0, %v608
    %v611 = vcosq.f32.pop %v609
    %v612 = vsinq.f32.pop %v609
    %vm613 = vweird.f32 %v518
    %v614 = vadd.s32 %v610, 3
    %v615 = vand.u32 %v614, 3
    %vm616 = vcmp.lt.s32.totalorder %v615, 2
    %vm617 = vcmp.eq.s32.totalorder %v615, 0
    %v618 = vxor.u32 %v612, 2147483648
    %v619 = vsel %vm617, %v611, %v618
    %vm620 = vcmp.eq.s32.totalorder %v615, 2
    %v621 = vxor.u32 %v611, 2147483648
    %v622 = vsel %vm620, %v621, %v612
    %v623 = vsel %vm616, %v619, %v622
    %v624 = vsel %vm613, nan, %v623
    %625 = vst [vmem:[#allocation7] sm:$0xff] %v624
    // Predicated region
    $region22: #{tpu_custom_call.1} parent=1 // pred_check
      _
    $region23: #{tpu_custom_call.1} parent=1 // pred_check_branch
      %627 = sbr.rel (0) target = $region25
    $region24: #{tpu_custom_call.1} parent=1 // pred_region
      %s629 = ssub.s32 128, 64
      %630 = vsyncadd [#allocation4], %s629
      %s631 = sshll.u32 [#allocation7], 4
      %s632 = int_to_ptr.vmem [resolvable:$true] %s631
      %637 = dma.vmem_to_hbm [thread:$0]  %s632, 64, %s3, [#allocation4], 64, 64, 4
    $region25: #{tpu_custom_call.1} parent=1 // pred_fallthru
      _
    // Predicated region
    $region26: #{tpu_custom_call.1} parent=1 // pred_check
      _
    $region27: #{tpu_custom_call.1} parent=1 // pred_check_branch
      %639 = sbr.rel (0) target = $region29
    $region28: #{tpu_custom_call.1} parent=1 // pred_region
      %640 = dma.done [#allocation4], 128
    $region29: #{tpu_custom_call.1} parent=1 // pred_fallthru
      _
    %641 = vsyncpa [#allocation3], 1
    %642 = vsyncpa [#allocation6], 1
    %643 = vsyncpa [#allocation4], 1

</llo_original>
